<compile_context>
chip_gen: v5e
topology: v5e:2x2
jax: 0.10.0
libtpu: 0.0.40
codegen_flags: <defaults>
</compile_context>

<pallas_src>
import jax
import jax.numpy as jnp
from jax.experimental import pallas as pl
from jax.experimental.pallas import tpu as pltpu

LANE = 128
SUBLANE = 8


def _round_up(x, m):
    return ((x + m - 1) // m) * m


# ---------------------------------------------------------------------------
# Kernels
# ---------------------------------------------------------------------------
def _stagenet_kernel_with_hidden(
    x_ref, h_ref,
    wi_ref, bi_ref,          # fc_inp
    wh1_ref, bh1_ref,        # fc_hid[0]
    wh2_ref, bh2_ref,        # fc_hid[2]
    wo_ref, bo_ref,          # fused fc_out heads
    hs_ref, out_ref,
):
    # bf16 matmul operands, f32 accumulation, f32 elementwise math.
    x = x_ref[...].astype(jnp.bfloat16)
    h = h_ref[...].astype(jnp.bfloat16)

    h_inp = jnp.dot(x, wi_ref[...], preferred_element_type=jnp.float32) + bi_ref[...]

    t = jnp.tanh(
        jnp.dot(h, wh1_ref[...], preferred_element_type=jnp.float32) + bh1_ref[...]
    )
    h_hid = (
        jnp.dot(t.astype(jnp.bfloat16), wh2_ref[...],
                preferred_element_type=jnp.float32)
        + bh2_ref[...]
    )

    hs = jnp.tanh(h_inp + h_hid)
    hs_ref[...] = hs

    out_ref[...] = (
        jnp.dot(hs.astype(jnp.bfloat16), wo_ref[...],
                preferred_element_type=jnp.float32)
        + bo_ref[...]
    )


def _stagenet_kernel_no_hidden(
    x_ref,
    wi_ref, bi_ref,
    wo_ref, bo_ref,
    hs_ref, out_ref,
):
    x = x_ref[...].astype(jnp.bfloat16)
    hs = jnp.tanh(
        jnp.dot(x, wi_ref[...], preferred_element_type=jnp.float32) + bi_ref[...]
    )
    hs_ref[...] = hs
    out_ref[...] = (
        jnp.dot(hs.astype(jnp.bfloat16), wo_ref[...],
                preferred_element_type=jnp.float32)
        + bo_ref[...]
    )


# ---------------------------------------------------------------------------
# Parameter construction (mimics torch.nn.Linear default init, deterministic)
# ---------------------------------------------------------------------------
def _linear_params(key, in_dim, out_dim):
    kw, kb = jax.random.split(key)
    bound = 1.0 / jnp.sqrt(jnp.float32(in_dim))
    # stored as [in_dim, out_dim] (transposed vs torch's [out, in])
    w = jax.random.uniform(kw, (in_dim, out_dim), jnp.float32, -bound, bound)
    b = jax.random.uniform(kb, (1, out_dim), jnp.float32, -bound, bound)
    return w, b


def init_stagenet_params(key, input_dim, in_hidden_dim, hidden_dim, output_dims):
    keys = jax.random.split(key, 4 + len(output_dims))
    params = {}
    params["fc_inp"] = _linear_params(keys[0], input_dim, hidden_dim)
    if in_hidden_dim:
        params["fc_hid1"] = _linear_params(keys[1], in_hidden_dim, hidden_dim)
        params["fc_hid2"] = _linear_params(keys[2], hidden_dim, hidden_dim)
    heads = [
        _linear_params(keys[3 + i], hidden_dim, od) for i, od in enumerate(output_dims)
    ]
    # fuse output heads: [hidden_dim, sum(output_dims)]
    params["fc_out_w"] = jnp.concatenate([w for (w, _) in heads], axis=1)
    params["fc_out_b"] = jnp.concatenate([b for (_, b) in heads], axis=1)
    return params


def _pad2(a, rows, cols):
    return jnp.pad(a, ((0, rows - a.shape[0]), (0, cols - a.shape[1])))


def pack_params_for_kernel(params, input_dim, in_hidden_dim, hidden_dim, output_dims):
    """Zero-pad all feature dims to 128 lanes; weights stored as bf16, biases f32."""
    d_in_p = _round_up(input_dim, LANE)
    h_p = _round_up(hidden_dim, LANE)
    o_p = _round_up(sum(output_dims), LANE)

    packed = {}
    wi, bi = params["fc_inp"]
    packed["wi"] = _pad2(wi, d_in_p, h_p).astype(jnp.bfloat16)
    packed["bi"] = _pad2(bi, 1, h_p)
    if in_hidden_dim:
        d_hid_p = _round_up(in_hidden_dim, LANE)
        w1, b1 = params["fc_hid1"]
        w2, b2 = params["fc_hid2"]
        packed["wh1"] = _pad2(w1, d_hid_p, h_p).astype(jnp.bfloat16)
        packed["bh1"] = _pad2(b1, 1, h_p)
        packed["wh2"] = _pad2(w2, h_p, h_p).astype(jnp.bfloat16)
        packed["bh2"] = _pad2(b2, 1, h_p)
    packed["wo"] = _pad2(params["fc_out_w"], h_p, o_p).astype(jnp.bfloat16)
    packed["bo"] = _pad2(params["fc_out_b"], 1, o_p)
    return packed


# ---------------------------------------------------------------------------
# Wrapper
# ---------------------------------------------------------------------------
def stagenet_forward(packed, x, hidden, input_dim, in_hidden_dim, hidden_dim,
                     output_dims):
    batch = x.shape[0]
    d_in_p = _round_up(input_dim, LANE)
    h_p = _round_up(hidden_dim, LANE)
    o_p = _round_up(sum(output_dims), LANE)

    # Batch tile: multiple of 8 sublanes, capped at 256 rows (VMEM-safe on v7x).
    tile_b = min(_round_up(batch, SUBLANE), 256)
    b_p = _round_up(batch, tile_b)
    grid = (b_p // tile_b,)

    x_p = jnp.pad(x, ((0, b_p - batch), (0, d_in_p - input_dim)))

    def act_spec(feat):
        return pl.BlockSpec((tile_b, feat), lambda i: (i, 0))

    def w_spec(r, c):
        # Same block for every grid step -> weights stay VMEM-resident.
        return pl.BlockSpec((r, c), lambda i: (0, 0))

    out_shapes = (
        jax.ShapeDtypeStruct((b_p, h_p), jnp.float32),
        jax.ShapeDtypeStruct((b_p, o_p), jnp.float32),
    )
    out_specs = (act_spec(h_p), act_spec(o_p))

    if in_hidden_dim:
        d_hid_p = _round_up(in_hidden_dim, LANE)
        h_pad = jnp.pad(hidden, ((0, b_p - batch), (0, d_hid_p - in_hidden_dim)))
        args = (
            x_p, h_pad,
            packed["wi"], packed["bi"],
            packed["wh1"], packed["bh1"],
            packed["wh2"], packed["bh2"],
            packed["wo"], packed["bo"],
        )
        in_specs = [
            act_spec(d_in_p), act_spec(d_hid_p),
            w_spec(d_in_p, h_p), w_spec(1, h_p),
            w_spec(d_hid_p, h_p), w_spec(1, h_p),
            w_spec(h_p, h_p), w_spec(1, h_p),
            w_spec(h_p, o_p), w_spec(1, o_p),
        ]
        kernel = _stagenet_kernel_with_hidden
    else:
        args = (x_p, packed["wi"], packed["bi"], packed["wo"], packed["bo"])
        in_specs = [
            act_spec(d_in_p),
            w_spec(d_in_p, h_p), w_spec(1, h_p),
            w_spec(h_p, o_p), w_spec(1, o_p),
        ]
        kernel = _stagenet_kernel_no_hidden

    hs_p, out_p = pl.pallas_call(
        kernel,
        out_shape=out_shapes,
        grid=grid,
        in_specs=in_specs,
        out_specs=out_specs,
        compiler_params=pltpu.CompilerParams(
            dimension_semantics=("parallel",),      # batch axis -> megacore on v7x
            vmem_limit_bytes=32 * 1024 * 1024,      # safe on v5e/v6e/v7x
        ),
    )(*args)

    # Slice padding off and split heads back into a list (matches torch `outs`).
    hs = hs_p[:batch, :hidden_dim]
    outs = []
    off = 0
    for od in output_dims:
        outs.append(out_p[:batch, off:off + od])
        off += od
    return hs, outs


# ---------------------------------------------------------------------------
# Pure-JAX reference (mirrors the kernel's bf16-operand / f32-accumulate math)
# ---------------------------------------------------------------------------
def stagenet_ref(params, x, hidden, in_hidden_dim, output_dims):
    bf16 = jnp.bfloat16
    wi, bi = params["fc_inp"]
    h_inp = jnp.dot(x.astype(bf16), wi.astype(bf16),
                    preferred_element_type=jnp.float32) + bi
    if in_hidden_dim:
        w1, b1 = params["fc_hid1"]
        w2, b2 = params["fc_hid2"]
        t = jnp.tanh(jnp.dot(hidden.astype(bf16), w1.astype(bf16),
                             preferred_element_type=jnp.float32) + b1)
        h_hid = jnp.dot(t.astype(bf16), w2.astype(bf16),
                        preferred_element_type=jnp.float32) + b2
        hs = jnp.tanh(h_inp + h_hid)
    else:
        hs = jnp.tanh(h_inp)
    outs_concat = jnp.dot(hs.astype(bf16), params["fc_out_w"].astype(bf16),
                          preferred_element_type=jnp.float32) + params["fc_out_b"]
    outs = []
    off = 0
    for od in output_dims:
        outs.append(outs_concat[:, off:off + od])
        off += od
    return hs, outs


# ---------------------------------------------------------------------------
# Main
# ---------------------------------------------------------------------------
if __name__ == "__main__":
    batch = 8
    input_dim = 16
    in_hidden_dim = 24
    hidden_dim = 32
    output_dims = [4, 3, 2]

    key = jax.random.PRNGKey(0)
    k_params, k_x, k_h = jax.random.split(key, 3)

    params = init_stagenet_params(
        k_params, input_dim, in_hidden_dim, hidden_dim, output_dims
    )
    packed = pack_params_for_kernel(
        params, input_dim, in_hidden_dim, hidden_dim, output_dims
    )
    x = jax.random.normal(k_x, (batch, input_dim), jnp.float32)
    hidden = jax.random.normal(k_h, (batch, in_hidden_dim), jnp.float32)

    TOL = 2e-3

    # --- case 1: with previous hidden state (in_hidden_dim set) ---
    hs, outs = stagenet_forward(
        packed, x, hidden, input_dim, in_hidden_dim, hidden_dim, output_dims
    )
    jax.block_until_ready(hs)
    for o in outs:
        jax.block_until_ready(o)

    hs_ref, outs_ref = stagenet_ref(params, x, hidden, in_hidden_dim, output_dims)
    assert jnp.allclose(hs, hs_ref, atol=TOL, rtol=TOL)
    for o, o_r in zip(outs, outs_ref):
        assert jnp.allclose(o, o_r, atol=TOL, rtol=TOL)

    # --- case 2: no previous hidden state (in_hidden_dim = None) ---
    params_nh = init_stagenet_params(
        k_params, input_dim, None, hidden_dim, output_dims
    )
    packed_nh = pack_params_for_kernel(
        params_nh, input_dim, None, hidden_dim, output_dims
    )
    hs2, outs2 = stagenet_forward(
        packed_nh, x, None, input_dim, None, hidden_dim, output_dims
    )
    jax.block_until_ready(hs2)
    hs2_ref, outs2_ref = stagenet_ref(params_nh, x, None, None, output_dims)
    assert jnp.allclose(hs2, hs2_ref, atol=TOL, rtol=TOL)
    for o, o_r in zip(outs2, outs2_ref):
        assert jnp.allclose(o, o_r, atol=TOL, rtol=TOL)

    print("KERNEL_OK")
</pallas_src>

<mosaic_0001>
module attributes {stable_mosaic.version = 11 : i64} {
  func.func @_stagenet_kernel_with_hidden(%arg0: i32, %arg1: memref<8x128xf32, #tpu.memory_space<vmem>>, %arg2: memref<8x128xf32, #tpu.memory_space<vmem>>, %arg3: memref<128x128xbf16, #tpu.memory_space<vmem>>, %arg4: memref<1x128xf32, #tpu.memory_space<vmem>>, %arg5: memref<128x128xbf16, #tpu.memory_space<vmem>>, %arg6: memref<1x128xf32, #tpu.memory_space<vmem>>, %arg7: memref<128x128xbf16, #tpu.memory_space<vmem>>, %arg8: memref<1x128xf32, #tpu.memory_space<vmem>>, %arg9: memref<128x128xbf16, #tpu.memory_space<vmem>>, %arg10: memref<1x128xf32, #tpu.memory_space<vmem>>, %arg11: memref<8x128xf32, #tpu.memory_space<vmem>>, %arg12: memref<8x128xf32, #tpu.memory_space<vmem>>) attributes {dimension_semantics = [#tpu.dimension_semantics<parallel>], iteration_bounds = array<i64: 1>, scalar_prefetch = 0 : i64, scratch_operands = 0 : i64, tpu.core_type = #tpu.core_type<tc>, window_params = [{transform_indices = @transform_0, window_bounds = array<i64: 8, 128>}, {transform_indices = @transform_1, window_bounds = array<i64: 8, 128>}, {pipeline_mode = #tpu.pipeline_mode<synchronous>, transform_indices = @transform_2, window_bounds = array<i64: 128, 128>}, {pipeline_mode = #tpu.pipeline_mode<synchronous>, transform_indices = @transform_3, window_bounds = array<i64: 1, 128>}, {pipeline_mode = #tpu.pipeline_mode<synchronous>, transform_indices = @transform_4, window_bounds = array<i64: 128, 128>}, {pipeline_mode = #tpu.pipeline_mode<synchronous>, transform_indices = @transform_5, window_bounds = array<i64: 1, 128>}, {pipeline_mode = #tpu.pipeline_mode<synchronous>, transform_indices = @transform_6, window_bounds = array<i64: 128, 128>}, {pipeline_mode = #tpu.pipeline_mode<synchronous>, transform_indices = @transform_7, window_bounds = array<i64: 1, 128>}, {pipeline_mode = #tpu.pipeline_mode<synchronous>, transform_indices = @transform_8, window_bounds = array<i64: 128, 128>}, {pipeline_mode = #tpu.pipeline_mode<synchronous>, transform_indices = @transform_9, window_bounds = array<i64: 1, 128>}, {transform_indices = @transform_10, window_bounds = array<i64: 8, 128>}, {transform_indices = @transform_11, window_bounds = array<i64: 8, 128>}]} {
    %c0 = arith.constant 0 : index
    %c0_0 = arith.constant 0 : index
    %0 = vector.load %arg1[%c0, %c0_0] : memref<8x128xf32, #tpu.memory_space<vmem>>, vector<8x128xf32>
    %1 = arith.truncf %0 : vector<8x128xf32> to vector<8x128xbf16>
    %c0_1 = arith.constant 0 : index
    %c0_2 = arith.constant 0 : index
    %2 = vector.load %arg2[%c0_1, %c0_2] : memref<8x128xf32, #tpu.memory_space<vmem>>, vector<8x128xf32>
    %3 = arith.truncf %2 : vector<8x128xf32> to vector<8x128xbf16>
    %c0_3 = arith.constant 0 : index
    %c0_4 = arith.constant 0 : index
    %4 = vector.load %arg3[%c0_3, %c0_4] : memref<128x128xbf16, #tpu.memory_space<vmem>>, vector<128x128xbf16>
    %cst = arith.constant dense<0.000000e+00> : vector<8x128xf32>
    %5 = tpu.matmul %1, %4, %cst {dimension_numbers = #tpu.dot_dimension_numbers<[1], [0], [0], [1], [0, 0, 1, 1], [], []>} : vector<8x128xbf16>, vector<128x128xbf16>, vector<8x128xf32> -> vector<8x128xf32>
    %c0_5 = arith.constant 0 : index
    %c0_6 = arith.constant 0 : index
    %6 = vector.load %arg4[%c0_5, %c0_6] : memref<1x128xf32, #tpu.memory_space<vmem>>, vector<1x128xf32>
    %7 = vector.broadcast %6 : vector<1x128xf32> to vector<8x128xf32>
    %8 = arith.addf %5, %7 : vector<8x128xf32>
    %c0_7 = arith.constant 0 : index
    %c0_8 = arith.constant 0 : index
    %9 = vector.load %arg5[%c0_7, %c0_8] : memref<128x128xbf16, #tpu.memory_space<vmem>>, vector<128x128xbf16>
    %cst_9 = arith.constant dense<0.000000e+00> : vector<8x128xf32>
    %10 = tpu.matmul %3, %9, %cst_9 {dimension_numbers = #tpu.dot_dimension_numbers<[1], [0], [0], [1], [0, 0, 1, 1], [], []>} : vector<8x128xbf16>, vector<128x128xbf16>, vector<8x128xf32> -> vector<8x128xf32>
    %c0_10 = arith.constant 0 : index
    %c0_11 = arith.constant 0 : index
    %11 = vector.load %arg6[%c0_10, %c0_11] : memref<1x128xf32, #tpu.memory_space<vmem>>, vector<1x128xf32>
    %12 = vector.broadcast %11 : vector<1x128xf32> to vector<8x128xf32>
    %13 = arith.addf %10, %12 : vector<8x128xf32>
    %14 = math.tanh %13 : vector<8x128xf32>
    %15 = arith.truncf %14 : vector<8x128xf32> to vector<8x128xbf16>
    %c0_12 = arith.constant 0 : index
    %c0_13 = arith.constant 0 : index
    %16 = vector.load %arg7[%c0_12, %c0_13] : memref<128x128xbf16, #tpu.memory_space<vmem>>, vector<128x128xbf16>
    %cst_14 = arith.constant dense<0.000000e+00> : vector<8x128xf32>
    %17 = tpu.matmul %15, %16, %cst_14 {dimension_numbers = #tpu.dot_dimension_numbers<[1], [0], [0], [1], [0, 0, 1, 1], [], []>} : vector<8x128xbf16>, vector<128x128xbf16>, vector<8x128xf32> -> vector<8x128xf32>
    %c0_15 = arith.constant 0 : index
    %c0_16 = arith.constant 0 : index
    %18 = vector.load %arg8[%c0_15, %c0_16] : memref<1x128xf32, #tpu.memory_space<vmem>>, vector<1x128xf32>
    %19 = vector.broadcast %18 : vector<1x128xf32> to vector<8x128xf32>
    %20 = arith.addf %17, %19 : vector<8x128xf32>
    %21 = arith.addf %8, %20 : vector<8x128xf32>
    %22 = math.tanh %21 : vector<8x128xf32>
    %c0_17 = arith.constant 0 : index
    %c0_18 = arith.constant 0 : index
    %23 = vector.load %arg11[%c0_17, %c0_18] : memref<8x128xf32, #tpu.memory_space<vmem>>, vector<8x128xf32>
    tpu.vector_store %arg11[%c0_17, %c0_18], %22 {strides = array<i32>} : memref<8x128xf32, #tpu.memory_space<vmem>>, vector<8x128xf32>,
    %24 = arith.truncf %22 : vector<8x128xf32> to vector<8x128xbf16>
    %c0_19 = arith.constant 0 : index
    %c0_20 = arith.constant 0 : index
    %25 = vector.load %arg9[%c0_19, %c0_20] : memref<128x128xbf16, #tpu.memory_space<vmem>>, vector<128x128xbf16>
    %cst_21 = arith.constant dense<0.000000e+00> : vector<8x128xf32>
    %26 = tpu.matmul %24, %25, %cst_21 {dimension_numbers = #tpu.dot_dimension_numbers<[1], [0], [0], [1], [0, 0, 1, 1], [], []>} : vector<8x128xbf16>, vector<128x128xbf16>, vector<8x128xf32> -> vector<8x128xf32>
    %c0_22 = arith.constant 0 : index
    %c0_23 = arith.constant 0 : index
    %27 = vector.load %arg10[%c0_22, %c0_23] : memref<1x128xf32, #tpu.memory_space<vmem>>, vector<1x128xf32>
    %28 = vector.broadcast %27 : vector<1x128xf32> to vector<8x128xf32>
    %29 = arith.addf %26, %28 : vector<8x128xf32>
    %c0_24 = arith.constant 0 : index
    %c0_25 = arith.constant 0 : index
    %30 = vector.load %arg12[%c0_24, %c0_25] : memref<8x128xf32, #tpu.memory_space<vmem>>, vector<8x128xf32>
    tpu.vector_store %arg12[%c0_24, %c0_25], %29 {strides = array<i32>} : memref<8x128xf32, #tpu.memory_space<vmem>>, vector<8x128xf32>,
    return
  }
  func.func @transform_0(%arg0: i32) -> (i32, i32) {
    %c0_i32 = arith.constant 0 : i32
    %c0_i32_0 = arith.constant 0 : i32
    return %arg0, %c0_i32 : i32, i32
  }
  func.func @transform_1(%arg0: i32) -> (i32, i32) {
    %c0_i32 = arith.constant 0 : i32
    %c0_i32_0 = arith.constant 0 : i32
    return %arg0, %c0_i32 : i32, i32
  }
  func.func @transform_2(%arg0: i32) -> (i32, i32) {
    %c0_i32 = arith.constant 0 : i32
    %c0_i32_0 = arith.constant 0 : i32
    %c0_i32_1 = arith.constant 0 : i32
    return %c0_i32, %c0_i32_0 : i32, i32
  }
  func.func @transform_3(%arg0: i32) -> (i32, i32) {
    %c0_i32 = arith.constant 0 : i32
    %c0_i32_0 = arith.constant 0 : i32
    %c0_i32_1 = arith.constant 0 : i32
    return %c0_i32, %c0_i32_0 : i32, i32
  }
  func.func @transform_4(%arg0: i32) -> (i32, i32) {
    %c0_i32 = arith.constant 0 : i32
    %c0_i32_0 = arith.constant 0 : i32
    %c0_i32_1 = arith.constant 0 : i32
    return %c0_i32, %c0_i32_0 : i32, i32
  }
  func.func @transform_5(%arg0: i32) -> (i32, i32) {
    %c0_i32 = arith.constant 0 : i32
    %c0_i32_0 = arith.constant 0 : i32
    %c0_i32_1 = arith.constant 0 : i32
    return %c0_i32, %c0_i32_0 : i32, i32
  }
  func.func @transform_6(%arg0: i32) -> (i32, i32) {
    %c0_i32 = arith.constant 0 : i32
    %c0_i32_0 = arith.constant 0 : i32
    %c0_i32_1 = arith.constant 0 : i32
    return %c0_i32, %c0_i32_0 : i32, i32
  }
  func.func @transform_7(%arg0: i32) -> (i32, i32) {
    %c0_i32 = arith.constant 0 : i32
    %c0_i32_0 = arith.constant 0 : i32
    %c0_i32_1 = arith.constant 0 : i32
    return %c0_i32, %c0_i32_0 : i32, i32
  }
  func.func @transform_8(%arg0: i32) -> (i32, i32) {
    %c0_i32 = arith.constant 0 : i32
    %c0_i32_0 = arith.constant 0 : i32
    %c0_i32_1 = arith.constant 0 : i32
    return %c0_i32, %c0_i32_0 : i32, i32
  }
  func.func @transform_9(%arg0: i32) -> (i32, i32) {
    %c0_i32 = arith.constant 0 : i32
    %c0_i32_0 = arith.constant 0 : i32
    %c0_i32_1 = arith.constant 0 : i32
    return %c0_i32, %c0_i32_0 : i32, i32
  }
  func.func @transform_10(%arg0: i32) -> (i32, i32) {
    %c0_i32 = arith.constant 0 : i32
    %c0_i32_0 = arith.constant 0 : i32
    return %arg0, %c0_i32 : i32, i32
  }
  func.func @transform_11(%arg0: i32) -> (i32, i32) {
    %c0_i32 = arith.constant 0 : i32
    %c0_i32_0 = arith.constant 0 : i32
    return %arg0, %c0_i32 : i32, i32
  }
}

</mosaic_0001>

<llo_original>
// kernel: tpu_custom_call.1
$region0: #{tpu_custom_call.1}
  #allocation0 [shape = 'u32[]', space=smem, size = 0x4, offset = 0x4, fixed_abs, tag = 'smem constant byte address 0x4 - core index']
  #allocation1 [shape = 'u32[72,128]{1,0:T(1,128)}', space=vmem, size = 0x9000, scoped, tag = 'internal scratch']
  %s0 = inlined_call_operand.hbm [shape: f32[8,128], index: 0, kind: input, shape index: {}]
  %s1 = inlined_call_operand.hbm [shape: f32[8,128], index: 1, kind: input, shape index: {}]
  %s2 = inlined_call_operand.hbm [shape: bf16[128,128], index: 2, kind: input, shape index: {}]
  %s3 = inlined_call_operand.vmem [shape: f32[1,128], index: 3, kind: input, shape index: {}]
  %s4 = inlined_call_operand.hbm [shape: bf16[128,128], index: 4, kind: input, shape index: {}]
  %s5 = inlined_call_operand.vmem [shape: f32[1,128], index: 5, kind: input, shape index: {}]
  %s6 = inlined_call_operand.hbm [shape: bf16[128,128], index: 6, kind: input, shape index: {}]
  %s7 = inlined_call_operand.vmem [shape: f32[1,128], index: 7, kind: input, shape index: {}]
  %s8 = inlined_call_operand.hbm [shape: bf16[128,128], index: 8, kind: input, shape index: {}]
  %s9 = inlined_call_operand.vmem [shape: f32[1,128], index: 9, kind: input, shape index: {}]
  %s10 = inlined_call_operand.hbm [shape: f32[8,128], index: 10, kind: output, shape index: {0}]
  %s11 = inlined_call_operand.hbm [shape: f32[8,128], index: 11, kind: output, shape index: {1}]
  %12 = xla_tuple %s10, %s11
  %s13 = sld [smem:[#allocation0]]
  $region82: #{tpu_custom_call.1} parent=0
    _
  %s15 = ssub.s32 1, %s13
  %s16 = scalar_select 0, %s15, %s13
  $region1: #{tpu_custom_call.1} parent=0
    #allocation2 [shape = 'u8[4096]{0}', space=vmem, size = 0x1000, scoped, tag = 'input window, operand 0, single buffered']
    #allocation3 [shape = 's32[1]{0}', space=sflag, size = 0x4, scoped, tag = 'scoped memory for tpu_custom_call.1']
    #allocation4 [shape = 's32[1]{0}', space=sflag, size = 0x4, scoped, tag = 'scoped memory for tpu_custom_call.1']
    #allocation5 [shape = 'u8[4096]{0}', space=vmem, size = 0x1000, scoped, tag = 'input window, operand 1, single buffered']
    #allocation6 [shape = 's32[1]{0}', space=sflag, size = 0x4, scoped, tag = 'scoped memory for tpu_custom_call.1']
    #allocation7 [shape = 'u8[32768]{0}', space=vmem, size = 0x8000, scoped, tag = 'input window, operand 2, single buffered']
    #allocation8 [shape = 'u8[32768]{0}', space=vmem, size = 0x8000, scoped, tag = 'input window, operand 4, single buffered']
    #allocation9 [shape = 's32[1]{0}', space=sflag, size = 0x4, scoped, tag = 'scoped memory for tpu_custom_call.1']
    #allocation10 [shape = 'u8[32768]{0}', space=vmem, size = 0x8000, scoped, tag = 'input window, operand 6, single buffered']
    #allocation11 [shape = 'u8[32768]{0}', space=vmem, size = 0x8000, scoped, tag = 'input window, operand 8, single buffered']
    #allocation12 [shape = 's32[1]{0}', space=sflag, size = 0x4, scoped, tag = 'scoped memory for tpu_custom_call.1']
    #allocation13 [shape = 'u8[4096]{0}', space=vmem, size = 0x1000, scoped, tag = 'output window, operand 0, single buffered']
    #allocation14 [shape = 'u8[4096]{0}', space=vmem, size = 0x1000, scoped, tag = 'output window, operand 1, single buffered']
    #allocation15 [shape = 's32[1]{0}', space=sflag, size = 0x4, scoped, tag = 'scoped memory for tpu_custom_call.1']
    %17 = vsyncpa [#allocation3], 0
    %18 = vsyncpa [#allocation6], 0
    %19 = vsyncpa [#allocation9], 0
    %20 = vsyncpa [#allocation12], 0
    %21 = vsyncpa [#allocation4], 0
    %22 = vsyncpa [#allocation15], 0
    // Predicated region
    $region2: #{tpu_custom_call.1} parent=1 // pred_check
      _
    $region3: #{tpu_custom_call.1} parent=1 // pred_check_branch
      %24 = sbr.rel (0) target = $region5
    $region4: #{tpu_custom_call.1} parent=1 // pred_region
      %26 = vsyncadd [#allocation3], 0
      %s28 = sshll.u32 %s0, 4
      %s29 = int_to_ptr.hbm [resolvable:$true] %s28
      %s30 = sshll.u32 [#allocation2], 4
      %s31 = int_to_ptr.vmem [resolvable:$true] %s30
      %33 = dma.hbm_to_vmem [thread:$0]  %s29, 128, %s31, [#allocation3]
    $region5: #{tpu_custom_call.1} parent=1 // pred_fallthru
      _
    // Predicated region
    $region6: #{tpu_custom_call.1} parent=1 // pred_check
      _
    $region7: #{tpu_custom_call.1} parent=1 // pred_check_branch
      %35 = sbr.rel (0) target = $region9
    $region8: #{tpu_custom_call.1} parent=1 // pred_region
      %37 = vsyncadd [#allocation6], 0
      %s39 = sshll.u32 %s1, 4
      %s40 = int_to_ptr.hbm [resolvable:$true] %s39
      %s41 = sshll.u32 [#allocation5], 4
      %s42 = int_to_ptr.vmem [resolvable:$true] %s41
      %44 = dma.hbm_to_vmem [thread:$0]  %s40, 128, %s42, [#allocation6]
    $region9: #{tpu_custom_call.1} parent=1 // pred_fallthru
      _
    // Predicated region
    $region10: #{tpu_custom_call.1} parent=1 // pred_check
      _
    $region11: #{tpu_custom_call.1} parent=1 // pred_check_branch
      %46 = sbr.rel (0) target = $region13
    $region12: #{tpu_custom_call.1} parent=1 // pred_region
      %48 = vsyncadd [#allocation6], 0
      %s49 = sshll.u32 %s2, 4
      %s50 = int_to_ptr.hbm [resolvable:$true] %s49
      %s51 = sshll.u32 [#allocation7], 4
      %s52 = int_to_ptr.vmem [resolvable:$true] %s51
      %57 = dma.hbm_to_vmem [thread:$0]  %s50, 1024, %s52, [#allocation6], 64, 64, 4
    $region13: #{tpu_custom_call.1} parent=1 // pred_fallthru
      _
    // Predicated region
    $region14: #{tpu_custom_call.1} parent=1 // pred_check
      _
    $region15: #{tpu_custom_call.1} parent=1 // pred_check_branch
      %59 = sbr.rel (0) target = $region17
    $region16: #{tpu_custom_call.1} parent=1 // pred_region
      _
    $region17: #{tpu_custom_call.1} parent=1 // pred_fallthru
      _
    // Predicated region
    $region18: #{tpu_custom_call.1} parent=1 // pred_check
      _
    $region19: #{tpu_custom_call.1} parent=1 // pred_check_branch
      %61 = sbr.rel (0) target = $region21
    $region20: #{tpu_custom_call.1} parent=1 // pred_region
      %63 = vsyncadd [#allocation9], 0
      %s64 = sshll.u32 %s4, 4
      %s65 = int_to_ptr.hbm [resolvable:$true] %s64
      %s66 = sshll.u32 [#allocation8], 4
      %s67 = int_to_ptr.vmem [resolvable:$true] %s66
      %72 = dma.hbm_to_vmem [thread:$0]  %s65, 1024, %s67, [#allocation9], 64, 64, 4
    $region21: #{tpu_custom_call.1} parent=1 // pred_fallthru
      _
    // Predicated region
    $region22: #{tpu_custom_call.1} parent=1 // pred_check
      _
    $region23: #{tpu_custom_call.1} parent=1 // pred_check_branch
      %74 = sbr.rel (0) target = $region25
    $region24: #{tpu_custom_call.1} parent=1 // pred_region
      _
    $region25: #{tpu_custom_call.1} parent=1 // pred_fallthru
      _
    // Predicated region
    $region26: #{tpu_custom_call.1} parent=1 // pred_check
      _
    $region27: #{tpu_custom_call.1} parent=1 // pred_check_branch
      %76 = sbr.rel (0) target = $region29
    $region28: #{tpu_custom_call.1} parent=1 // pred_region
      %78 = vsyncadd [#allocation9], 0
      %s79 = sshll.u32 %s6, 4
      %s80 = int_to_ptr.hbm [resolvable:$true] %s79
      %s81 = sshll.u32 [#allocation10], 4
      %s82 = int_to_ptr.vmem [resolvable:$true] %s81
      %87 = dma.hbm_to_vmem [thread:$0]  %s80, 1024, %s82, [#allocation9], 64, 64, 4
    $region29: #{tpu_custom_call.1} parent=1 // pred_fallthru
      _
    // Predicated region
    $region30: #{tpu_custom_call.1} parent=1 // pred_check
      _
    $region31: #{tpu_custom_call.1} parent=1 // pred_check_branch
      %89 = sbr.rel (0) target = $region33
    $region32: #{tpu_custom_call.1} parent=1 // pred_region
      _
    $region33: #{tpu_custom_call.1} parent=1 // pred_fallthru
      _
    // Predicated region
    $region34: #{tpu_custom_call.1} parent=1 // pred_check
      _
    $region35: #{tpu_custom_call.1} parent=1 // pred_check_branch
      %91 = sbr.rel (0) target = $region37
    $region36: #{tpu_custom_call.1} parent=1 // pred_region
      %93 = vsyncadd [#allocation12], 0
      %s94 = sshll.u32 %s8, 4
      %s95 = int_to_ptr.hbm [resolvable:$true] %s94
      %s96 = sshll.u32 [#allocation11], 4
      %s97 = int_to_ptr.vmem [resolvable:$true] %s96
      %102 = dma.hbm_to_vmem [thread:$0]  %s95, 1024, %s97, [#allocation12], 64, 64, 4
    $region37: #{tpu_custom_call.1} parent=1 // pred_fallthru
      _
    // Predicated region
    $region38: #{tpu_custom_call.1} parent=1 // pred_check
      _
    $region39: #{tpu_custom_call.1} parent=1 // pred_check_branch
      %104 = sbr.rel (0) target = $region41
    $region40: #{tpu_custom_call.1} parent=1 // pred_region
      _
    $region41: #{tpu_custom_call.1} parent=1 // pred_fallthru
      _
    // Predicated region
    $region42: #{tpu_custom_call.1} parent=1 // pred_check
      _
    $region43: #{tpu_custom_call.1} parent=1 // pred_check_branch
      %106 = sbr.rel (0) target = $region45
    $region44: #{tpu_custom_call.1} parent=1 // pred_region
      %108 = dma.done [#allocation3], 128
    $region45: #{tpu_custom_call.1} parent=1 // pred_fallthru
      _
    // Predicated region
    $region46: #{tpu_custom_call.1} parent=1 // pred_check
      _
    $region47: #{tpu_custom_call.1} parent=1 // pred_check_branch
      %110 = sbr.rel (0) target = $region49
    $region48: #{tpu_custom_call.1} parent=1 // pred_region
      %112 = dma.done [#allocation6], 128
    $region49: #{tpu_custom_call.1} parent=1 // pred_fallthru
      _
    // Predicated region
    $region50: #{tpu_custom_call.1} parent=1 // pred_check
      _
    $region51: #{tpu_custom_call.1} parent=1 // pred_check_branch
      %114 = sbr.rel (0) target = $region53
    $region52: #{tpu_custom_call.1} parent=1 // pred_region
      %116 = dma.done [#allocation6], 1024
    $region53: #{tpu_custom_call.1} parent=1 // pred_fallthru
      _
    // Predicated region
    $region54: #{tpu_custom_call.1} parent=1 // pred_check
      _
    $region55: #{tpu_custom_call.1} parent=1 // pred_check_branch
      %118 = sbr.rel (0) target = $region57
    $region56: #{tpu_custom_call.1} parent=1 // pred_region
      %120 = dma.done [#allocation9], 1024
    $region57: #{tpu_custom_call.1} parent=1 // pred_fallthru
      _
    // Predicated region
    $region58: #{tpu_custom_call.1} parent=1 // pred_check
      _
    $region59: #{tpu_custom_call.1} parent=1 // pred_check_branch
      %122 = sbr.rel (0) target = $region61
    $region60: #{tpu_custom_call.1} parent=1 // pred_region
      %124 = dma.done [#allocation9], 1024
    $region61: #{tpu_custom_call.1} parent=1 // pred_fallthru
      _
    // Predicated region
    $region62: #{tpu_custom_call.1} parent=1 // pred_check
      _
    $region63: #{tpu_custom_call.1} parent=1 // pred_check_branch
      %126 = sbr.rel (0) target = $region65
    $region64: #{tpu_custom_call.1} parent=1 // pred_region
      %128 = dma.done [#allocation12], 1024
    $region65: #{tpu_custom_call.1} parent=1 // pred_fallthru
      _
    %v129 = vld [vmem:[#allocation2] sm:$0xff]
    %v130 = vpack.c.bf16 %v129, %v129
    %v131 = vld [vmem:[#allocation5] sm:$0xff]
    %v132 = vpack.c.bf16 %v131, %v131
    %v133 = vld [vmem:[#allocation7] sm:$0xf]
    %v134 = vld [vmem:[#allocation7 + $0x4] sm:$0xf]
    %v135 = vld [vmem:[#allocation7 + $0x8] sm:$0xf]
    %v136 = vld [vmem:[#allocation7 + $0xc] sm:$0xf]
    %v137 = vld [vmem:[#allocation7 + $0x10] sm:$0xf]
    %v138 = vld [vmem:[#allocation7 + $0x14] sm:$0xf]
    %v139 = vld [vmem:[#allocation7 + $0x18] sm:$0xf]
    %v140 = vld [vmem:[#allocation7 + $0x1c] sm:$0xf]
    %v141 = vld [vmem:[#allocation7 + $0x20] sm:$0xf]
    %v142 = vld [vmem:[#allocation7 + $0x24] sm:$0xf]
    %v143 = vld [vmem:[#allocation7 + $0x28] sm:$0xf]
    %v144 = vld [vmem:[#allocation7 + $0x2c] sm:$0xf]
    %v145 = vld [vmem:[#allocation7 + $0x30] sm:$0xf]
    %v146 = vld [vmem:[#allocation7 + $0x34] sm:$0xf]
    %v147 = vld [vmem:[#allocation7 + $0x38] sm:$0xf]
    %v148 = vld [vmem:[#allocation7 + $0x3c] sm:$0xf]
    %v149 = vld [vmem:[%s3] sm:$0x1]
    %v151 = vperm.slane %v149, 0
    %v169 = vunpack.c.l.b16 %v133
    %v170 = vunpack.c.l.b16 %v134
    %v171 = vunpack.c.l.b16 %v135
    %v172 = vunpack.c.l.b16 %v136
    %v173 = vunpack.c.l.b16 %v137
    %v174 = vunpack.c.l.b16 %v138
    %v175 = vunpack.c.l.b16 %v139
    %v176 = vunpack.c.l.b16 %v140
    %v177 = vunpack.c.l.b16 %v141
    %v178 = vunpack.c.l.b16 %v142
    %v179 = vunpack.c.l.b16 %v143
    %v180 = vunpack.c.l.b16 %v144
    %v181 = vunpack.c.l.b16 %v145
    %v182 = vunpack.c.l.b16 %v146
    %v183 = vunpack.c.l.b16 %v147
    %v184 = vunpack.c.l.b16 %v148
    %v185 = vpack.c.b16 %v170, %v169
    %v186 = vpack.c.b16 %v172, %v171
    %v187 = vpack.c.b16 %v174, %v173
    %v188 = vpack.c.b16 %v176, %v175
    %v189 = vpack.c.b16 %v178, %v177
    %v190 = vpack.c.b16 %v180, %v179
    %v191 = vpack.c.b16 %v182, %v181
    %v192 = vpack.c.b16 %v184, %v183
    %201 = vmatpush.bf16.msra.mxu0 %v192
    %202 = vmatpush.bf16.msra.mxu0 %v191
    %203 = vmatpush.bf16.msra.mxu0 %v190
    %204 = vmatpush.bf16.msra.mxu0 %v189
    %205 = vmatpush.bf16.msra.mxu0 %v188
    %206 = vmatpush.bf16.msra.mxu0 %v187
    %207 = vmatpush.bf16.msra.mxu0 %v186
    %208 = vmatpush.bf16.msra.mxu0 %v185
    %209 = vmatmul.bf16.gmra.mxu0 %v130
    %v210 = vpop.f32.mrf.mxu0
    %v211 = vadd.f32 %v151, %v210
    %v212 = vpop.f32.mrf.mxu0
    %213 = vdwg.mxu0
    %v214 = vld [vmem:[#allocation8] sm:$0xf]
    %v215 = vld [vmem:[#allocation8 + $0x4] sm:$0xf]
    %v216 = vld [vmem:[#allocation8 + $0x8] sm:$0xf]
    %v217 = vld [vmem:[#allocation8 + $0xc] sm:$0xf]
    %v218 = vld [vmem:[#allocation8 + $0x10] sm:$0xf]
    %v219 = vld [vmem:[#allocation8 + $0x14] sm:$0xf]
    %v220 = vld [vmem:[#allocation8 + $0x18] sm:$0xf]
    %v221 = vld [vmem:[#allocation8 + $0x1c] sm:$0xf]
    %v222 = vld [vmem:[#allocation8 + $0x20] sm:$0xf]
    %v223 = vld [vmem:[#allocation8 + $0x24] sm:$0xf]
    %v224 = vld [vmem:[#allocation8 + $0x28] sm:$0xf]
    %v225 = vld [vmem:[#allocation8 + $0x2c] sm:$0xf]
    %v226 = vld [vmem:[#allocation8 + $0x30] sm:$0xf]
    %v227 = vld [vmem:[#allocation8 + $0x34] sm:$0xf]
    %v228 = vld [vmem:[#allocation8 + $0x38] sm:$0xf]
    %v229 = vld [vmem:[#allocation8 + $0x3c] sm:$0xf]
    %v230 = vld [vmem:[%s5] sm:$0x1]
    %v232 = vperm.slane %v230, 0
    %v250 = vunpack.c.l.b16 %v214
    %v251 = vunpack.c.l.b16 %v215
    %v252 = vunpack.c.l.b16 %v216
    %v253 = vunpack.c.l.b16 %v217
    %v254 = vunpack.c.l.b16 %v218
    %v255 = vunpack.c.l.b16 %v219
    %v256 = vunpack.c.l.b16 %v220
    %v257 = vunpack.c.l.b16 %v221
    %v258 = vunpack.c.l.b16 %v222
    %v259 = vunpack.c.l.b16 %v223
    %v260 = vunpack.c.l.b16 %v224
    %v261 = vunpack.c.l.b16 %v225
    %v262 = vunpack.c.l.b16 %v226
    %v263 = vunpack.c.l.b16 %v227
    %v264 = vunpack.c.l.b16 %v228
    %v265 = vunpack.c.l.b16 %v229
    %v266 = vpack.c.b16 %v251, %v250
    %v267 = vpack.c.b16 %v253, %v252
    %v268 = vpack.c.b16 %v255, %v254
    %v269 = vpack.c.b16 %v257, %v256
    %v270 = vpack.c.b16 %v259, %v258
    %v271 = vpack.c.b16 %v261, %v260
    %v272 = vpack.c.b16 %v263, %v262
    %v273 = vpack.c.b16 %v265, %v264
    %282 = vmatpush.bf16.msra.mxu0 %v273
    %283 = vmatpush.bf16.msra.mxu0 %v272
    %284 = vmatpush.bf16.msra.mxu0 %v271
    %285 = vmatpush.bf16.msra.mxu0 %v270
    %286 = vmatpush.bf16.msra.mxu0 %v269
    %287 = vmatpush.bf16.msra.mxu0 %v268
    %288 = vmatpush.bf16.msra.mxu0 %v267
    %289 = vmatpush.bf16.msra.mxu0 %v266
    %290 = vmatmul.bf16.gmra.mxu0 %v132
    %v291 = vpop.f32.mrf.mxu0
    %v292 = vadd.f32 %v232, %v291
    %v293 = vpop.f32.mrf.mxu0
    %294 = vdwg.mxu0
    %v295 = vtanh.pop %v292
    %v296 = vpack.c.bf16 %v295, %v295
    %v297 = vld [vmem:[#allocation10] sm:$0xf]
    %v298 = vld [vmem:[#allocation10 + $0x4] sm:$0xf]
    %v299 = vld [vmem:[#allocation10 + $0x8] sm:$0xf]
    %v300 = vld [vmem:[#allocation10 + $0xc] sm:$0xf]
    %v301 = vld [vmem:[#allocation10 + $0x10] sm:$0xf]
    %v302 = vld [vmem:[#allocation10 + $0x14] sm:$0xf]
    %v303 = vld [vmem:[#allocation10 + $0x18] sm:$0xf]
    %v304 = vld [vmem:[#allocation10 + $0x1c] sm:$0xf]
    %v305 = vld [vmem:[#allocation10 + $0x20] sm:$0xf]
    %v306 = vld [vmem:[#allocation10 + $0x24] sm:$0xf]
    %v307 = vld [vmem:[#allocation10 + $0x28] sm:$0xf]
    %v308 = vld [vmem:[#allocation10 + $0x2c] sm:$0xf]
    %v309 = vld [vmem:[#allocation10 + $0x30] sm:$0xf]
    %v310 = vld [vmem:[#allocation10 + $0x34] sm:$0xf]
    %v311 = vld [vmem:[#allocation10 + $0x38] sm:$0xf]
    %v312 = vld [vmem:[#allocation10 + $0x3c] sm:$0xf]
    %v313 = vld [vmem:[%s7] sm:$0x1]
    %v315 = vperm.slane %v313, 0
    %v333 = vunpack.c.l.b16 %v297
    %v334 = vunpack.c.l.b16 %v298
    %v335 = vunpack.c.l.b16 %v299
    %v336 = vunpack.c.l.b16 %v300
    %v337 = vunpack.c.l.b16 %v301
    %v338 = vunpack.c.l.b16 %v302
    %v339 = vunpack.c.l.b16 %v303
    %v340 = vunpack.c.l.b16 %v304
    %v341 = vunpack.c.l.b16 %v305
    %v342 = vunpack.c.l.b16 %v306
    %v343 = vunpack.c.l.b16 %v307
    %v344 = vunpack.c.l.b16 %v308
    %v345 = vunpack.c.l.b16 %v309
    %v346 = vunpack.c.l.b16 %v310
    %v347 = vunpack.c.l.b16 %v311
    %v348 = vunpack.c.l.b16 %v312
    %v349 = vpack.c.b16 %v334, %v333
    %v350 = vpack.c.b16 %v336, %v335
    %v351 = vpack.c.b16 %v338, %v337
    %v352 = vpack.c.b16 %v340, %v339
    %v353 = vpack.c.b16 %v342, %v341
    %v354 = vpack.c.b16 %v344, %v343
    %v355 = vpack.c.b16 %v346, %v345
    %v356 = vpack.c.b16 %v348, %v347
    %365 = vmatpush.bf16.msra.mxu0 %v356
    %366 = vmatpush.bf16.msra.mxu0 %v355
    %367 = vmatpush.bf16.msra.mxu0 %v354
    %368 = vmatpush.bf16.msra.mxu0 %v353
    %369 = vmatpush.bf16.msra.mxu0 %v352
    %370 = vmatpush.bf16.msra.mxu0 %v351
    %371 = vmatpush.bf16.msra.mxu0 %v350
    %372 = vmatpush.bf16.msra.mxu0 %v349
    %373 = vmatmul.bf16.gmra.mxu0 %v296
    %v374 = vpop.f32.mrf.mxu0
    %v375 = vadd.f32 %v315, %v374
    %v376 = vpop.f32.mrf.mxu0
    %377 = vdwg.mxu0
    %v378 = vadd.f32 %v211, %v375
    %v379 = vtanh.pop %v378
    %380 = vst [vmem:[#allocation13] sm:$0xff] %v379
    %v381 = vpack.c.bf16 %v379, %v379
    %v382 = vld [vmem:[#allocation11] sm:$0xf]
    %v383 = vld [vmem:[#allocation11 + $0x4] sm:$0xf]
    %v384 = vld [vmem:[#allocation11 + $0x8] sm:$0xf]
    %v385 = vld [vmem:[#allocation11 + $0xc] sm:$0xf]
    %v386 = vld [vmem:[#allocation11 + $0x10] sm:$0xf]
    %v387 = vld [vmem:[#allocation11 + $0x14] sm:$0xf]
    %v388 = vld [vmem:[#allocation11 + $0x18] sm:$0xf]
    %v389 = vld [vmem:[#allocation11 + $0x1c] sm:$0xf]
    %v390 = vld [vmem:[#allocation11 + $0x20] sm:$0xf]
    %v391 = vld [vmem:[#allocation11 + $0x24] sm:$0xf]
    %v392 = vld [vmem:[#allocation11 + $0x28] sm:$0xf]
    %v393 = vld [vmem:[#allocation11 + $0x2c] sm:$0xf]
    %v394 = vld [vmem:[#allocation11 + $0x30] sm:$0xf]
    %v395 = vld [vmem:[#allocation11 + $0x34] sm:$0xf]
    %v396 = vld [vmem:[#allocation11 + $0x38] sm:$0xf]
    %v397 = vld [vmem:[#allocation11 + $0x3c] sm:$0xf]
    %v398 = vld [vmem:[%s9] sm:$0x1]
    %v400 = vperm.slane %v398, 0
    %v418 = vunpack.c.l.b16 %v382
    %v419 = vunpack.c.l.b16 %v383
    %v420 = vunpack.c.l.b16 %v384
    %v421 = vunpack.c.l.b16 %v385
    %v422 = vunpack.c.l.b16 %v386
    %v423 = vunpack.c.l.b16 %v387
    %v424 = vunpack.c.l.b16 %v388
    %v425 = vunpack.c.l.b16 %v389
    %v426 = vunpack.c.l.b16 %v390
    %v427 = vunpack.c.l.b16 %v391
    %v428 = vunpack.c.l.b16 %v392
    %v429 = vunpack.c.l.b16 %v393
    %v430 = vunpack.c.l.b16 %v394
    %v431 = vunpack.c.l.b16 %v395
    %v432 = vunpack.c.l.b16 %v396
    %v433 = vunpack.c.l.b16 %v397
    %v434 = vpack.c.b16 %v419, %v418
    %v435 = vpack.c.b16 %v421, %v420
    %v436 = vpack.c.b16 %v423, %v422
    %v437 = vpack.c.b16 %v425, %v424
    %v438 = vpack.c.b16 %v427, %v426
    %v439 = vpack.c.b16 %v429, %v428
    %v440 = vpack.c.b16 %v431, %v430
    %v441 = vpack.c.b16 %v433, %v432
    %450 = vmatpush.bf16.msra.mxu0 %v441
    %451 = vmatpush.bf16.msra.mxu0 %v440
    %452 = vmatpush.bf16.msra.mxu0 %v439
    %453 = vmatpush.bf16.msra.mxu0 %v438
    %454 = vmatpush.bf16.msra.mxu0 %v437
    %455 = vmatpush.bf16.msra.mxu0 %v436
    %456 = vmatpush.bf16.msra.mxu0 %v435
    %457 = vmatpush.bf16.msra.mxu0 %v434
    %458 = vmatmul.bf16.gmra.mxu0 %v381
    %v459 = vpop.f32.mrf.mxu0
    %v460 = vadd.f32 %v400, %v459
    %v461 = vpop.f32.mrf.mxu0
    %462 = vdwg.mxu0
    %463 = vst [vmem:[#allocation14] sm:$0xff] %v460
    // Predicated region
    $region66: #{tpu_custom_call.1} parent=1 // pred_check
      _
    $region67: #{tpu_custom_call.1} parent=1 // pred_check_branch
      %465 = sbr.rel (0) target = $region69
    $region68: #{tpu_custom_call.1} parent=1 // pred_region
      %467 = vsyncadd [#allocation4], 0
      %s469 = sshll.u32 [#allocation13], 4
      %s470 = int_to_ptr.vmem [resolvable:$true] %s469
      %s471 = sshll.u32 %s10, 4
      %s472 = int_to_ptr.hbm [resolvable:$true] %s471
      %474 = dma.vmem_to_hbm [thread:$0]  %s470, 128, %s472, [#allocation4]
    $region69: #{tpu_custom_call.1} parent=1 // pred_fallthru
      _
    // Predicated region
    $region70: #{tpu_custom_call.1} parent=1 // pred_check
      _
    $region71: #{tpu_custom_call.1} parent=1 // pred_check_branch
      %476 = sbr.rel (0) target = $region73
    $region72: #{tpu_custom_call.1} parent=1 // pred_region
      %478 = vsyncadd [#allocation15], 0
      %s480 = sshll.u32 [#allocation14], 4
      %s481 = int_to_ptr.vmem [resolvable:$true] %s480
      %s482 = sshll.u32 %s11, 4
      %s483 = int_to_ptr.hbm [resolvable:$true] %s482
      %485 = dma.vmem_to_hbm [thread:$0]  %s481, 128, %s483, [#allocation15]
    $region73: #{tpu_custom_call.1} parent=1 // pred_fallthru
      _
    // Predicated region
    $region74: #{tpu_custom_call.1} parent=1 // pred_check
      _
    $region75: #{tpu_custom_call.1} parent=1 // pred_check_branch
      %487 = sbr.rel (0) target = $region77
    $region76: #{tpu_custom_call.1} parent=1 // pred_region
      %489 = dma.done [#allocation4], 128
    $region77: #{tpu_custom_call.1} parent=1 // pred_fallthru
      _
    // Predicated region
    $region78: #{tpu_custom_call.1} parent=1 // pred_check
      _
    $region79: #{tpu_custom_call.1} parent=1 // pred_check_branch
      %491 = sbr.rel (0) target = $region81
    $region80: #{tpu_custom_call.1} parent=1 // pred_region
      %493 = dma.done [#allocation15], 128
    $region81: #{tpu_custom_call.1} parent=1 // pred_fallthru
      _
    %494 = vsyncpa [#allocation3], 1
    %495 = vsyncpa [#allocation6], 1
    %496 = vsyncpa [#allocation9], 1
    %497 = vsyncpa [#allocation12], 1
    %498 = vsyncpa [#allocation4], 1
    %499 = vsyncpa [#allocation15], 1

</llo_original>
